<compile_context>
chip_gen: v7x
topology: tpu7x:2x2x1
jax: 0.10.0
libtpu: 0.0.40
codegen_flags: <defaults>
</compile_context>

<pallas_src>
import jax
import jax.numpy as jnp
from jax.experimental import pallas as pl
from jax.experimental.pallas import tpu as pltpu

IN_DIM = 3
H1 = 64
H2 = 128
OUT_DIM = 2

TM_DEFAULT = 8192  # lane-axis row tile; sweep 4096-16384 for huge point clouds


def _mlp_kernel(x_ref, w1_ref, b1_ref, w2_ref, b2_ref, w3_ref, b3_ref, o_ref):
    x = x_ref[...]       # (3, TM)  f32
    w1 = w1_ref[...]     # (64, 3)  f32

    # Layer 1 (3 -> 64) on the VPU: three broadcast-FMAs, f32 accumulation.
    # w1[:, k:k+1] is (64,1) lane-broadcast; x[k:k+1, :] is (1,TM) sublane-broadcast.
    h1 = (w1[:, 0:1] * x[0:1, :]
          + w1[:, 1:2] * x[1:2, :]
          + w1[:, 2:3] * x[2:3, :]
          + b1_ref[...])                               # (64, TM) f32
    # ReLU after the bf16 cast (monotone, exact) -> half VALU slots on v6e/v7x.
    h1 = jnp.maximum(h1.astype(jnp.bfloat16), 0)       # (64, TM) bf16

    # Layer 2 (64 -> 128): bf16 MXU matmul, f32 accumulation.
    h2 = jnp.dot(w2_ref[...], h1,
                 preferred_element_type=jnp.float32)    # (128, TM) f32
    # Bias-add + ReLU in bf16 (single cast of the dot output).
    h2 = jnp.maximum(h2.astype(jnp.bfloat16) + b2_ref[...], 0)  # (128, TM) bf16

    # Layer 3 (128 -> 2): bf16 MXU matmul -> lane-dense (2, TM) result.
    out = jnp.dot(w3_ref[...], h2,
                  preferred_element_type=jnp.float32) + b3_ref[...]
    o_ref[...] = out.astype(o_ref.dtype)


def pointnet_seg_forward(x, params, *, tm=TM_DEFAULT):
    """x: (B, N, IN_DIM) float32 -> (B, N, OUT_DIM) float32."""
    w1, b1, w2, b2, w3, b3 = params   # weights (out,in), biases (out,1)
    B, N, C = x.shape
    assert C == IN_DIM
    M = B * N

    # Row tile must be a multiple of 128 (lane axis); shrink for tiny inputs.
    tm = max(128, min(tm, ((M + 127) // 128) * 128))
    m_pad = ((M + tm - 1) // tm) * tm

    # Feature-major layout: (3, M_pad).  Transpose + minor-axis tail pad are a
    # single wrapper-side copy (layout plumbing); padded columns are zeros.
    xT = jnp.transpose(x.reshape(M, C))
    if m_pad != M:
        xT = jnp.pad(xT, ((0, 0), (0, m_pad - M)))

    # MXU operands / bf16 elementwise path in bf16; layer-1 stays f32 (VPU).
    w2b = w2.astype(jnp.bfloat16)
    b2b = b2.astype(jnp.bfloat16)
    w3b = w3.astype(jnp.bfloat16)

    grid = (m_pad // tm,)
    const = lambda shape: pl.BlockSpec(shape, lambda i: (0, 0))

    outT = pl.pallas_call(
        _mlp_kernel,
        out_shape=jax.ShapeDtypeStruct((OUT_DIM, m_pad), jnp.float32),
        grid=grid,
        in_specs=[
            pl.BlockSpec((IN_DIM, tm), lambda i: (0, i)),  # x tile (3, TM)
            const((H1, IN_DIM)),                           # w1 (VMEM resident)
            const((H1, 1)),                                # b1
            const((H2, H1)),                               # w2 (bf16)
            const((H2, 1)),                                # b2 (bf16)
            const((OUT_DIM, H2)),                          # w3 (bf16)
            const((OUT_DIM, 1)),                           # b3
        ],
        out_specs=pl.BlockSpec((OUT_DIM, tm), lambda i: (0, i)),
        compiler_params=pltpu.CompilerParams(
            # "parallel" lets the row grid shard across v7x's 2 TensorCores.
            dimension_semantics=("parallel",),
            # Explicit scoped-VMEM budget: ~12-16 MiB needed at TM=8192;
            # 48 MiB leaves headroom and stays under v7x's 64 MiB physical.
            vmem_limit_bytes=48 * 1024 * 1024,
        ),
    )(xT, w1, b1, w2b, b2b, w3b, b3)

    return jnp.transpose(outT[:, :M]).reshape(B, N, OUT_DIM)


def init_params(key):
    """Deterministic init matching PyTorch nn.Linear (weights stored (out, in))."""
    ks = jax.random.split(key, 6)

    def linear(kw, kb, fan_in, fan_out):
        bound = 1.0 / jnp.sqrt(fan_in)
        w = jax.random.uniform(kw, (fan_out, fan_in), jnp.float32, -bound, bound)
        b = jax.random.uniform(kb, (fan_out, 1), jnp.float32, -bound, bound)
        return w, b

    w1, b1 = linear(ks[0], ks[1], IN_DIM, H1)
    w2, b2 = linear(ks[2], ks[3], H1, H2)
    w3, b3 = linear(ks[4], ks[5], H2, OUT_DIM)
    return (w1, b1, w2, b2, w3, b3)


def _reference_forward(x, params):
    w1, b1, w2, b2, w3, b3 = params
    h = jax.nn.relu(x @ w1.T + b1[:, 0])
    h = jax.nn.relu(h @ w2.T + b2[:, 0])
    return h @ w3.T + b3[:, 0]


if __name__ == "__main__":
    key = jax.random.PRNGKey(0)
    k_param, k_x, k_x2 = jax.random.split(key, 3)

    params = init_params(k_param)

    # Small point cloud: batch=2, 8 points per cloud, 3 input features.
    B, N = 2, 8
    x = jax.random.normal(k_x, (B, N, IN_DIM), dtype=jnp.float32)

    out = jax.block_until_ready(pointnet_seg_forward(x, params))
    ref = _reference_forward(x, params)
    assert out.shape == (B, N, OUT_DIM), out.shape
    # bf16 MXU matmuls / bf16 bias+ReLU (f32 accumulation) vs pure-f32 reference.
    assert jnp.allclose(out, ref, atol=2e-2, rtol=2e-2), "mismatch vs reference"

    # Also exercise the non-tile-multiple (padded tail) path.
    B2, N2 = 2, 7
    x2 = jax.random.normal(k_x2, (B2, N2, IN_DIM), dtype=jnp.float32)
    out2 = jax.block_until_ready(pointnet_seg_forward(x2, params))
    ref2 = _reference_forward(x2, params)
    assert out2.shape == (B2, N2, OUT_DIM), out2.shape
    assert jnp.allclose(out2, ref2, atol=2e-2, rtol=2e-2), "mismatch (padded tail)"

    print("KERNEL_OK")
</pallas_src>

<mosaic_0001>
module attributes {stable_mosaic.version = 11 : i64} {
  func.func @_mlp_kernel(%arg0: i32, %arg1: memref<3x128xf32, #tpu.memory_space<vmem>>, %arg2: memref<64x3xf32, #tpu.memory_space<vmem>>, %arg3: memref<64x1xf32, #tpu.memory_space<vmem>>, %arg4: memref<128x64xbf16, #tpu.memory_space<vmem>>, %arg5: memref<128x1xbf16, #tpu.memory_space<vmem>>, %arg6: memref<2x128xbf16, #tpu.memory_space<vmem>>, %arg7: memref<2x1xf32, #tpu.memory_space<vmem>>, %arg8: memref<2x128xf32, #tpu.memory_space<vmem>>) attributes {dimension_semantics = [#tpu.dimension_semantics<parallel>], iteration_bounds = array<i64: 1>, scalar_prefetch = 0 : i64, scratch_operands = 0 : i64, tpu.core_type = #tpu.core_type<tc>, window_params = [{transform_indices = @transform_0, window_bounds = array<i64: 3, 128>}, {pipeline_mode = #tpu.pipeline_mode<synchronous>, transform_indices = @transform_1, window_bounds = array<i64: 64, 3>}, {pipeline_mode = #tpu.pipeline_mode<synchronous>, transform_indices = @transform_2, window_bounds = array<i64: 64, 1>}, {pipeline_mode = #tpu.pipeline_mode<synchronous>, transform_indices = @transform_3, window_bounds = array<i64: 128, 64>}, {pipeline_mode = #tpu.pipeline_mode<synchronous>, transform_indices = @transform_4, window_bounds = array<i64: 128, 1>}, {pipeline_mode = #tpu.pipeline_mode<synchronous>, transform_indices = @transform_5, window_bounds = array<i64: 2, 128>}, {pipeline_mode = #tpu.pipeline_mode<synchronous>, transform_indices = @transform_6, window_bounds = array<i64: 2, 1>}, {transform_indices = @transform_7, window_bounds = array<i64: 2, 128>}]} {
    %c0 = arith.constant 0 : index
    %c0_0 = arith.constant 0 : index
    %0 = vector.load %arg1[%c0, %c0_0] : memref<3x128xf32, #tpu.memory_space<vmem>>, vector<3x128xf32>
    %c0_1 = arith.constant 0 : index
    %c0_2 = arith.constant 0 : index
    %1 = vector.load %arg2[%c0_1, %c0_2] : memref<64x3xf32, #tpu.memory_space<vmem>>, vector<64x3xf32>
    %2 = vector.extract_strided_slice %1 {offsets = [0, 0], sizes = [64, 1], strides = [1, 1]} : vector<64x3xf32> to vector<64x1xf32>
    %3 = vector.extract_strided_slice %0 {offsets = [0, 0], sizes = [1, 128], strides = [1, 1]} : vector<3x128xf32> to vector<1x128xf32>
    %4 = vector.broadcast %2 : vector<64x1xf32> to vector<64x128xf32>
    %5 = vector.broadcast %3 : vector<1x128xf32> to vector<64x128xf32>
    %6 = arith.mulf %4, %5 : vector<64x128xf32>
    %7 = vector.extract_strided_slice %1 {offsets = [0, 1], sizes = [64, 1], strides = [1, 1]} : vector<64x3xf32> to vector<64x1xf32>
    %8 = vector.extract_strided_slice %0 {offsets = [1, 0], sizes = [1, 128], strides = [1, 1]} : vector<3x128xf32> to vector<1x128xf32>
    %9 = vector.broadcast %7 : vector<64x1xf32> to vector<64x128xf32>
    %10 = vector.broadcast %8 : vector<1x128xf32> to vector<64x128xf32>
    %11 = arith.mulf %9, %10 : vector<64x128xf32>
    %12 = arith.addf %6, %11 : vector<64x128xf32>
    %13 = vector.extract_strided_slice %1 {offsets = [0, 2], sizes = [64, 1], strides = [1, 1]} : vector<64x3xf32> to vector<64x1xf32>
    %14 = vector.extract_strided_slice %0 {offsets = [2, 0], sizes = [1, 128], strides = [1, 1]} : vector<3x128xf32> to vector<1x128xf32>
    %15 = vector.broadcast %13 : vector<64x1xf32> to vector<64x128xf32>
    %16 = vector.broadcast %14 : vector<1x128xf32> to vector<64x128xf32>
    %17 = arith.mulf %15, %16 : vector<64x128xf32>
    %18 = arith.addf %12, %17 : vector<64x128xf32>
    %c0_3 = arith.constant 0 : index
    %c0_4 = arith.constant 0 : index
    %19 = vector.load %arg3[%c0_3, %c0_4] : memref<64x1xf32, #tpu.memory_space<vmem>>, vector<64x1xf32>
    %20 = vector.broadcast %19 : vector<64x1xf32> to vector<64x128xf32>
    %21 = arith.addf %18, %20 : vector<64x128xf32>
    %22 = arith.truncf %21 : vector<64x128xf32> to vector<64x128xbf16>
    %cst = arith.constant 0.000000e+00 : bf16
    %23 = vector.broadcast %cst : bf16 to vector<64x128xbf16>
    %24 = arith.maximumf %22, %23 : vector<64x128xbf16>
    %c0_5 = arith.constant 0 : index
    %c0_6 = arith.constant 0 : index
    %25 = vector.load %arg4[%c0_5, %c0_6] : memref<128x64xbf16, #tpu.memory_space<vmem>>, vector<128x64xbf16>
    %cst_7 = arith.constant dense<0.000000e+00> : vector<128x128xf32>
    %26 = tpu.matmul %25, %24, %cst_7 {dimension_numbers = #tpu.dot_dimension_numbers<[1], [0], [0], [1], [0, 0, 1, 1], [], []>} : vector<128x64xbf16>, vector<64x128xbf16>, vector<128x128xf32> -> vector<128x128xf32>
    %27 = arith.truncf %26 : vector<128x128xf32> to vector<128x128xbf16>
    %c0_8 = arith.constant 0 : index
    %c0_9 = arith.constant 0 : index
    %28 = vector.load %arg5[%c0_8, %c0_9] : memref<128x1xbf16, #tpu.memory_space<vmem>>, vector<128x1xbf16>
    %29 = vector.broadcast %28 : vector<128x1xbf16> to vector<128x128xbf16>
    %30 = arith.addf %27, %29 : vector<128x128xbf16>
    %cst_10 = arith.constant 0.000000e+00 : bf16
    %31 = vector.broadcast %cst_10 : bf16 to vector<128x128xbf16>
    %32 = arith.maximumf %30, %31 : vector<128x128xbf16>
    %c0_11 = arith.constant 0 : index
    %c0_12 = arith.constant 0 : index
    %33 = vector.load %arg6[%c0_11, %c0_12] : memref<2x128xbf16, #tpu.memory_space<vmem>>, vector<2x128xbf16>
    %cst_13 = arith.constant dense<0.000000e+00> : vector<2x128xf32>
    %34 = tpu.matmul %33, %32, %cst_13 {dimension_numbers = #tpu.dot_dimension_numbers<[1], [0], [0], [1], [0, 0, 1, 1], [], []>} : vector<2x128xbf16>, vector<128x128xbf16>, vector<2x128xf32> -> vector<2x128xf32>
    %c0_14 = arith.constant 0 : index
    %c0_15 = arith.constant 0 : index
    %35 = vector.load %arg7[%c0_14, %c0_15] : memref<2x1xf32, #tpu.memory_space<vmem>>, vector<2x1xf32>
    %36 = vector.broadcast %35 : vector<2x1xf32> to vector<2x128xf32>
    %37 = arith.addf %34, %36 : vector<2x128xf32>
    %c0_16 = arith.constant 0 : index
    %c0_17 = arith.constant 0 : index
    %38 = vector.load %arg8[%c0_16, %c0_17] : memref<2x128xf32, #tpu.memory_space<vmem>>, vector<2x128xf32>
    tpu.vector_store %arg8[%c0_16, %c0_17], %37 {strides = array<i32>} : memref<2x128xf32, #tpu.memory_space<vmem>>, vector<2x128xf32>,
    return
  }
  func.func @transform_0(%arg0: i32) -> (i32, i32) {
    %c0_i32 = arith.constant 0 : i32
    %c0_i32_0 = arith.constant 0 : i32
    return %c0_i32, %arg0 : i32, i32
  }
  func.func @transform_1(%arg0: i32) -> (i32, i32) {
    %c0_i32 = arith.constant 0 : i32
    %c0_i32_0 = arith.constant 0 : i32
    %c0_i32_1 = arith.constant 0 : i32
    return %c0_i32, %c0_i32_0 : i32, i32
  }
  func.func @transform_2(%arg0: i32) -> (i32, i32) {
    %c0_i32 = arith.constant 0 : i32
    %c0_i32_0 = arith.constant 0 : i32
    %c0_i32_1 = arith.constant 0 : i32
    return %c0_i32, %c0_i32_0 : i32, i32
  }
  func.func @transform_3(%arg0: i32) -> (i32, i32) {
    %c0_i32 = arith.constant 0 : i32
    %c0_i32_0 = arith.constant 0 : i32
    %c0_i32_1 = arith.constant 0 : i32
    return %c0_i32, %c0_i32_0 : i32, i32
  }
  func.func @transform_4(%arg0: i32) -> (i32, i32) {
    %c0_i32 = arith.constant 0 : i32
    %c0_i32_0 = arith.constant 0 : i32
    %c0_i32_1 = arith.constant 0 : i32
    return %c0_i32, %c0_i32_0 : i32, i32
  }
  func.func @transform_5(%arg0: i32) -> (i32, i32) {
    %c0_i32 = arith.constant 0 : i32
    %c0_i32_0 = arith.constant 0 : i32
    %c0_i32_1 = arith.constant 0 : i32
    return %c0_i32, %c0_i32_0 : i32, i32
  }
  func.func @transform_6(%arg0: i32) -> (i32, i32) {
    %c0_i32 = arith.constant 0 : i32
    %c0_i32_0 = arith.constant 0 : i32
    %c0_i32_1 = arith.constant 0 : i32
    return %c0_i32, %c0_i32_0 : i32, i32
  }
  func.func @transform_7(%arg0: i32) -> (i32, i32) {
    %c0_i32 = arith.constant 0 : i32
    %c0_i32_0 = arith.constant 0 : i32
    return %c0_i32, %arg0 : i32, i32
  }
}

</mosaic_0001>

<llo_original>
// kernel: tpu_custom_call.1
$region0: #{tpu_custom_call.1}
  #allocation0 [shape = 'u32[]', space=smem, size = 0x4, offset = 0x4, fixed_abs, tag = 'smem constant byte address 0x4 - core index']
  #allocation1 [shape = 'u32[144,128]{1,0:T(1,128)}', space=vmem, size = 0x12000, scoped, tag = 'internal scratch']
  %s0 = inlined_call_operand.vmem [shape: f32[3,128], index: 0, kind: input, shape index: {}]
  %s1 = inlined_call_operand.vmem [shape: f32[64,3], index: 1, kind: input, shape index: {}]
  %s2 = inlined_call_operand.vmem [shape: f32[64,1], index: 2, kind: input, shape index: {}]
  %s3 = inlined_call_operand.vmem [shape: bf16[128,64], index: 3, kind: input, shape index: {}]
  %s4 = inlined_call_operand.vmem [shape: bf16[128,1], index: 4, kind: input, shape index: {}]
  %s5 = inlined_call_operand.vmem [shape: bf16[2,128], index: 5, kind: input, shape index: {}]
  %s6 = inlined_call_operand.vmem [shape: f32[2,1], index: 6, kind: input, shape index: {}]
  %s7 = inlined_call_operand.hbm [shape: f32[2,128], index: 7, kind: output, shape index: {}]
  %s8 = sld [smem:[#allocation0]]
  $region38: #{tpu_custom_call.1} parent=0
    _
  %s10 = ssub.s32 1, %s8
  %s11 = scalar_select 0, %s10, %s8
  $region1: #{tpu_custom_call.1} parent=0
    #allocation2 [shape = 'u8[1024]{0}', space=vmem, size = 0x400, scoped, tag = 'output window, operand 0, single buffered']
    #allocation3 [shape = 's32[1]{0}', space=sflag, size = 0x4, scoped, tag = 'scoped memory for tpu_custom_call.1']
    %12 = vsyncpa [#allocation3], 0
    // Predicated region
    $region2: #{tpu_custom_call.1} parent=1 // pred_check
      _
    $region3: #{tpu_custom_call.1} parent=1 // pred_check_branch
      %14 = sbr.rel (0) target = $region5
    $region4: #{tpu_custom_call.1} parent=1 // pred_region
      _
    $region5: #{tpu_custom_call.1} parent=1 // pred_fallthru
      _
    // Predicated region
    $region6: #{tpu_custom_call.1} parent=1 // pred_check
      _
    $region7: #{tpu_custom_call.1} parent=1 // pred_check_branch
      %16 = sbr.rel (0) target = $region9
    $region8: #{tpu_custom_call.1} parent=1 // pred_region
      _
    $region9: #{tpu_custom_call.1} parent=1 // pred_fallthru
      _
    // Predicated region
    $region10: #{tpu_custom_call.1} parent=1 // pred_check
      _
    $region11: #{tpu_custom_call.1} parent=1 // pred_check_branch
      %18 = sbr.rel (0) target = $region13
    $region12: #{tpu_custom_call.1} parent=1 // pred_region
      _
    $region13: #{tpu_custom_call.1} parent=1 // pred_fallthru
      _
    // Predicated region
    $region14: #{tpu_custom_call.1} parent=1 // pred_check
      _
    $region15: #{tpu_custom_call.1} parent=1 // pred_check_branch
      %20 = sbr.rel (0) target = $region17
    $region16: #{tpu_custom_call.1} parent=1 // pred_region
      _
    $region17: #{tpu_custom_call.1} parent=1 // pred_fallthru
      _
    // Predicated region
    $region18: #{tpu_custom_call.1} parent=1 // pred_check
      _
    $region19: #{tpu_custom_call.1} parent=1 // pred_check_branch
      %22 = sbr.rel (0) target = $region21
    $region20: #{tpu_custom_call.1} parent=1 // pred_region
      _
    $region21: #{tpu_custom_call.1} parent=1 // pred_fallthru
      _
    // Predicated region
    $region22: #{tpu_custom_call.1} parent=1 // pred_check
      _
    $region23: #{tpu_custom_call.1} parent=1 // pred_check_branch
      %24 = sbr.rel (0) target = $region25
    $region24: #{tpu_custom_call.1} parent=1 // pred_region
      _
    $region25: #{tpu_custom_call.1} parent=1 // pred_fallthru
      _
    // Predicated region
    $region26: #{tpu_custom_call.1} parent=1 // pred_check
      _
    $region27: #{tpu_custom_call.1} parent=1 // pred_check_branch
      %26 = sbr.rel (0) target = $region29
    $region28: #{tpu_custom_call.1} parent=1 // pred_region
      _
    $region29: #{tpu_custom_call.1} parent=1 // pred_fallthru
      _
    %v28 = vld [vmem:[%s0] sm:$0x7]
    %v29 = vld [vmem:[%s1] sm:$0xff]
    %v30 = vld [vmem:[%s1 + $0x8] sm:$0xff]
    %v31 = vld [vmem:[%s1 + $0x10] sm:$0xff]
    %v32 = vld [vmem:[%s1 + $0x18] sm:$0xff]
    %v33 = vld [vmem:[%s1 + $0x20] sm:$0xff]
    %v34 = vld [vmem:[%s1 + $0x28] sm:$0xff]
    %v35 = vld [vmem:[%s1 + $0x30] sm:$0xff]
    %v36 = vld [vmem:[%s1 + $0x38] sm:$0xff]
    %38 = vset.pattern.permute.xlu0 0
    %39 = vperm.xlu0 %38, %v29
    %v40 = vpop.permute.xlu0 %39
    %43 = vset.pattern.permute.xlu0 0
    %44 = vperm.xlu0 %43, %v30
    %v45 = vpop.permute.xlu0 %44
    %48 = vset.pattern.permute.xlu0 0
    %49 = vperm.xlu0 %48, %v31
    %v50 = vpop.permute.xlu0 %49
    %53 = vset.pattern.permute.xlu0 0
    %54 = vperm.xlu0 %53, %v32
    %v55 = vpop.permute.xlu0 %54
    %58 = vset.pattern.permute.xlu0 0
    %59 = vperm.xlu0 %58, %v33
    %v60 = vpop.permute.xlu0 %59
    %63 = vset.pattern.permute.xlu0 0
    %64 = vperm.xlu0 %63, %v34
    %v65 = vpop.permute.xlu0 %64
    %68 = vset.pattern.permute.xlu0 0
    %69 = vperm.xlu0 %68, %v35
    %v70 = vpop.permute.xlu0 %69
    %73 = vset.pattern.permute.xlu0 0
    %74 = vperm.xlu0 %73, %v36
    %v75 = vpop.permute.xlu0 %74
    %v77 = vlaneseq
    %v78 = vshrl.u32 %v77, 7
    %v79 = vsub.s32 0, %v78
    %v80 = vrot.slane %v28, %v79
    %v81 = vmul.f32 %v40, %v80
    %v82 = vmul.f32 %v45, %v80
    %v83 = vmul.f32 %v50, %v80
    %v84 = vmul.f32 %v55, %v80
    %v85 = vmul.f32 %v60, %v80
    %v86 = vmul.f32 %v65, %v80
    %v87 = vmul.f32 %v70, %v80
    %v88 = vmul.f32 %v75, %v80
    %89 = vset.pattern.permute.xlu0 1
    %90 = vperm.xlu0 %89, %v29
    %v91 = vpop.permute.xlu0 %90
    %93 = vset.pattern.permute.xlu0 1
    %94 = vperm.xlu0 %93, %v30
    %v95 = vpop.permute.xlu0 %94
    %97 = vset.pattern.permute.xlu0 1
    %98 = vperm.xlu0 %97, %v31
    %v99 = vpop.permute.xlu0 %98
    %101 = vset.pattern.permute.xlu0 1
    %102 = vperm.xlu0 %101, %v32
    %v103 = vpop.permute.xlu0 %102
    %105 = vset.pattern.permute.xlu0 1
    %106 = vperm.xlu0 %105, %v33
    %v107 = vpop.permute.xlu0 %106
    %109 = vset.pattern.permute.xlu0 1
    %110 = vperm.xlu0 %109, %v34
    %v111 = vpop.permute.xlu0 %110
    %113 = vset.pattern.permute.xlu0 1
    %114 = vperm.xlu0 %113, %v35
    %v115 = vpop.permute.xlu0 %114
    %117 = vset.pattern.permute.xlu0 1
    %118 = vperm.xlu0 %117, %v36
    %v119 = vpop.permute.xlu0 %118
    %v121 = vlaneseq
    %v122 = vshrl.u32 %v121, 7
    %v123 = vsub.s32 1, %v122
    %v124 = vrot.slane %v28, %v123
    %v125 = vmul.f32 %v91, %v124
    %v126 = vmul.f32 %v95, %v124
    %v127 = vmul.f32 %v99, %v124
    %v128 = vmul.f32 %v103, %v124
    %v129 = vmul.f32 %v107, %v124
    %v130 = vmul.f32 %v111, %v124
    %v131 = vmul.f32 %v115, %v124
    %v132 = vmul.f32 %v119, %v124
    %v133 = vadd.f32 %v81, %v125
    %v134 = vadd.f32 %v82, %v126
    %v135 = vadd.f32 %v83, %v127
    %v136 = vadd.f32 %v84, %v128
    %v137 = vadd.f32 %v85, %v129
    %v138 = vadd.f32 %v86, %v130
    %v139 = vadd.f32 %v87, %v131
    %v140 = vadd.f32 %v88, %v132
    %141 = vset.pattern.permute.xlu0 2
    %142 = vperm.xlu0 %141, %v29
    %v143 = vpop.permute.xlu0 %142
    %145 = vset.pattern.permute.xlu0 2
    %146 = vperm.xlu0 %145, %v30
    %v147 = vpop.permute.xlu0 %146
    %149 = vset.pattern.permute.xlu0 2
    %150 = vperm.xlu0 %149, %v31
    %v151 = vpop.permute.xlu0 %150
    %153 = vset.pattern.permute.xlu0 2
    %154 = vperm.xlu0 %153, %v32
    %v155 = vpop.permute.xlu0 %154
    %157 = vset.pattern.permute.xlu0 2
    %158 = vperm.xlu0 %157, %v33
    %v159 = vpop.permute.xlu0 %158
    %161 = vset.pattern.permute.xlu0 2
    %162 = vperm.xlu0 %161, %v34
    %v163 = vpop.permute.xlu0 %162
    %165 = vset.pattern.permute.xlu0 2
    %166 = vperm.xlu0 %165, %v35
    %v167 = vpop.permute.xlu0 %166
    %169 = vset.pattern.permute.xlu0 2
    %170 = vperm.xlu0 %169, %v36
    %v171 = vpop.permute.xlu0 %170
    %v173 = vlaneseq
    %v174 = vshrl.u32 %v173, 7
    %v175 = vsub.s32 2, %v174
    %v176 = vrot.slane %v28, %v175
    %v177 = vmul.f32 %v143, %v176
    %v178 = vmul.f32 %v147, %v176
    %v179 = vmul.f32 %v151, %v176
    %v180 = vmul.f32 %v155, %v176
    %v181 = vmul.f32 %v159, %v176
    %v182 = vmul.f32 %v163, %v176
    %v183 = vmul.f32 %v167, %v176
    %v184 = vmul.f32 %v171, %v176
    %v185 = vadd.f32 %v133, %v177
    %v186 = vadd.f32 %v134, %v178
    %v187 = vadd.f32 %v135, %v179
    %v188 = vadd.f32 %v136, %v180
    %v189 = vadd.f32 %v137, %v181
    %v190 = vadd.f32 %v138, %v182
    %v191 = vadd.f32 %v139, %v183
    %v192 = vadd.f32 %v140, %v184
    %v193 = vld [vmem:[%s2] sm:$0xff]
    %v194 = vld [vmem:[%s2 + $0x8] sm:$0xff]
    %v195 = vld [vmem:[%s2 + $0x10] sm:$0xff]
    %v196 = vld [vmem:[%s2 + $0x18] sm:$0xff]
    %v197 = vld [vmem:[%s2 + $0x20] sm:$0xff]
    %v198 = vld [vmem:[%s2 + $0x28] sm:$0xff]
    %v199 = vld [vmem:[%s2 + $0x30] sm:$0xff]
    %v200 = vld [vmem:[%s2 + $0x38] sm:$0xff]
    %202 = vset.pattern.permute.xlu0 0
    %203 = vperm.xlu0 %202, %v193
    %v204 = vpop.permute.xlu0 %203
    %207 = vset.pattern.permute.xlu0 0
    %208 = vperm.xlu0 %207, %v194
    %v209 = vpop.permute.xlu0 %208
    %212 = vset.pattern.permute.xlu0 0
    %213 = vperm.xlu0 %212, %v195
    %v214 = vpop.permute.xlu0 %213
    %217 = vset.pattern.permute.xlu0 0
    %218 = vperm.xlu0 %217, %v196
    %v219 = vpop.permute.xlu0 %218
    %222 = vset.pattern.permute.xlu0 0
    %223 = vperm.xlu0 %222, %v197
    %v224 = vpop.permute.xlu0 %223
    %227 = vset.pattern.permute.xlu0 0
    %228 = vperm.xlu0 %227, %v198
    %v229 = vpop.permute.xlu0 %228
    %232 = vset.pattern.permute.xlu0 0
    %233 = vperm.xlu0 %232, %v199
    %v234 = vpop.permute.xlu0 %233
    %237 = vset.pattern.permute.xlu0 0
    %238 = vperm.xlu0 %237, %v200
    %v239 = vpop.permute.xlu0 %238
    %v241 = vadd.f32 %v185, %v204
    %v242 = vadd.f32 %v186, %v209
    %v243 = vadd.f32 %v187, %v214
    %v244 = vadd.f32 %v188, %v219
    %v245 = vadd.f32 %v189, %v224
    %v246 = vadd.f32 %v190, %v229
    %v247 = vadd.f32 %v191, %v234
    %v248 = vadd.f32 %v192, %v239
    %v249 = vpack.c.bf16 %v242, %v241
    %v250 = vpack.c.bf16 %v244, %v243
    %v251 = vpack.c.bf16 %v246, %v245
    %v252 = vpack.c.bf16 %v248, %v247
    %v253 = vmax.bf16 %v249, 0
    %v254 = vmax.bf16 %v250, 0
    %v255 = vmax.bf16 %v251, 0
    %v256 = vmax.bf16 %v252, 0
    %v257 = vld [vmem:[%s3] sm:$0xf]
    %v258 = vld [vmem:[%s3 + $0x4] sm:$0xf]
    %v259 = vld [vmem:[%s3 + $0x8] sm:$0xf]
    %v260 = vld [vmem:[%s3 + $0xc] sm:$0xf]
    %v261 = vld [vmem:[%s3 + $0x10] sm:$0xf]
    %v262 = vld [vmem:[%s3 + $0x14] sm:$0xf]
    %v263 = vld [vmem:[%s3 + $0x18] sm:$0xf]
    %v264 = vld [vmem:[%s3 + $0x1c] sm:$0xf]
    %v265 = vld [vmem:[%s3 + $0x20] sm:$0xf]
    %v266 = vld [vmem:[%s3 + $0x24] sm:$0xf]
    %v267 = vld [vmem:[%s3 + $0x28] sm:$0xf]
    %v268 = vld [vmem:[%s3 + $0x2c] sm:$0xf]
    %v269 = vld [vmem:[%s3 + $0x30] sm:$0xf]
    %v270 = vld [vmem:[%s3 + $0x34] sm:$0xf]
    %v271 = vld [vmem:[%s3 + $0x38] sm:$0xf]
    %v272 = vld [vmem:[%s3 + $0x3c] sm:$0xf]
    %v289 = vunpack.c.l.b16 %v257
    %v290 = vunpack.c.l.b16 %v258
    %v291 = vunpack.c.l.b16 %v259
    %v292 = vunpack.c.l.b16 %v260
    %v293 = vunpack.c.l.b16 %v261
    %v294 = vunpack.c.l.b16 %v262
    %v295 = vunpack.c.l.b16 %v263
    %v296 = vunpack.c.l.b16 %v264
    %v297 = vunpack.c.l.b16 %v265
    %v298 = vunpack.c.l.b16 %v266
    %v299 = vunpack.c.l.b16 %v267
    %v300 = vunpack.c.l.b16 %v268
    %v301 = vunpack.c.l.b16 %v269
    %v302 = vunpack.c.l.b16 %v270
    %v303 = vunpack.c.l.b16 %v271
    %v304 = vunpack.c.l.b16 %v272
    %v305 = vpack.c.b16 %v290, %v289
    %v306 = vpack.c.b16 %v292, %v291
    %v307 = vpack.c.b16 %v294, %v293
    %v308 = vpack.c.b16 %v296, %v295
    %v309 = vpack.c.b16 %v298, %v297
    %v310 = vpack.c.b16 %v300, %v299
    %v311 = vpack.c.b16 %v302, %v301
    %v312 = vpack.c.b16 %v304, %v303
    %vm313 = vcmask 523264
    %v315 = vsel %vm313, %v305, 0
    %v318 = vsel %vm313, %v306, 0
    %v321 = vsel %vm313, %v307, 0
    %v324 = vsel %vm313, %v308, 0
    %v327 = vsel %vm313, %v309, 0
    %v330 = vsel %vm313, %v310, 0
    %v333 = vsel %vm313, %v311, 0
    %v336 = vsel %vm313, %v312, 0
    %338 = vmatprep.subr.bf16.mxu0 0
    %339 = vmatpush1.bf16.msra.mxu0 %v253
    %340 = vmatprep.subr.bf16.mxu0 0
    %341 = vmatpush1.bf16.msra.mxu0 %v254
    %342 = vmatprep.subr.bf16.mxu0 0
    %343 = vmatpush1.bf16.msra.mxu0 %v255
    %344 = vmatprep.subr.bf16.mxu0 0
    %345 = vmatpush1.bf16.msra.mxu0 %v256
    %346 = vmatprep.subr.bf16.mxu0 0
    %347 = vmatpush1.bf16.msra.mxu0 0
    %348 = vmatprep.subr.bf16.mxu0 0
    %349 = vmatpush1.bf16.msra.mxu0 0
    %350 = vmatprep.subr.bf16.mxu0 0
    %351 = vmatpush1.bf16.msra.mxu0 0
    %352 = vmatprep.subr.bf16.mxu0 0
    %353 = vmatpush1.bf16.msra.mxu0 0
    %354 = vmatprep.subr.bf16.mxu0 0
    %355 = vmatpush1.bf16.msra.mxu0 0
    %356 = vmatprep.subr.bf16.mxu0 0
    %357 = vmatpush1.bf16.msra.mxu0 0
    %358 = vmatprep.subr.bf16.mxu0 0
    %359 = vmatpush1.bf16.msra.mxu0 0
    %360 = vmatprep.subr.bf16.mxu0 0
    %361 = vmatpush1.bf16.msra.mxu0 0
    %362 = vmatprep.subr.bf16.mxu0 0
    %363 = vmatpush1.bf16.msra.mxu0 0
    %364 = vmatprep.subr.bf16.mxu0 0
    %365 = vmatpush1.bf16.msra.mxu0 0
    %366 = vmatprep.subr.bf16.mxu0 0
    %367 = vmatpush1.bf16.msra.mxu0 0
    %368 = vmatprep.subr.bf16.mxu0 0
    %369 = vmatpush1.bf16.msra.mxu0 0
    %370 = vmatprep.mubr.bf16.mxu0 0
    %371 = vmatmul.mubr.bf16.gmra.mrb[0].mxu0 %v315
    %v372 = vpop.f32.mrb[0].mxu0
    %v373 = vadd.f32 0.0, %v372
    %v374 = vpop.f32.mrb[0].mxu0
    %v375 = vpop.f32.mrb[0].mxu0
    %v376 = vadd.f32 0.0, %v375
    %v377 = vpop.f32.mrb[0].mxu0
    %378 = vmatprep.mubr.bf16.mxu0 0
    %379 = vmatmul.mubr.bf16.gmra.mrb[0].mxu0 %v318
    %v380 = vpop.f32.mrb[0].mxu0
    %v381 = vadd.f32 0.0, %v380
    %v382 = vpop.f32.mrb[0].mxu0
    %v383 = vpop.f32.mrb[0].mxu0
    %v384 = vadd.f32 0.0, %v383
    %v385 = vpop.f32.mrb[0].mxu0
    %386 = vmatprep.mubr.bf16.mxu0 0
    %387 = vmatmul.mubr.bf16.gmra.mrb[0].mxu0 %v321
    %v388 = vpop.f32.mrb[0].mxu0
    %v389 = vadd.f32 0.0, %v388
    %v390 = vpop.f32.mrb[0].mxu0
    %v391 = vpop.f32.mrb[0].mxu0
    %v392 = vadd.f32 0.0, %v391
    %v393 = vpop.f32.mrb[0].mxu0
    %394 = vmatprep.mubr.bf16.mxu0 0
    %395 = vmatmul.mubr.bf16.gmra.mrb[0].mxu0 %v324
    %v396 = vpop.f32.mrb[0].mxu0
    %v397 = vadd.f32 0.0, %v396
    %v398 = vpop.f32.mrb[0].mxu0
    %v399 = vpop.f32.mrb[0].mxu0
    %v400 = vadd.f32 0.0, %v399
    %v401 = vpop.f32.mrb[0].mxu0
    %402 = vmatprep.mubr.bf16.mxu0 0
    %403 = vmatmul.mubr.bf16.gmra.mrb[0].mxu0 %v327
    %v404 = vpop.f32.mrb[0].mxu0
    %v405 = vadd.f32 0.0, %v404
    %v406 = vpop.f32.mrb[0].mxu0
    %v407 = vpop.f32.mrb[0].mxu0
    %v408 = vadd.f32 0.0, %v407
    %v409 = vpop.f32.mrb[0].mxu0
    %410 = vmatprep.mubr.bf16.mxu0 0
    %411 = vmatmul.mubr.bf16.gmra.mrb[0].mxu0 %v330
    %v412 = vpop.f32.mrb[0].mxu0
    %v413 = vadd.f32 0.0, %v412
    %v414 = vpop.f32.mrb[0].mxu0
    %v415 = vpop.f32.mrb[0].mxu0
    %v416 = vadd.f32 0.0, %v415
    %v417 = vpop.f32.mrb[0].mxu0
    %418 = vmatprep.mubr.bf16.mxu0 0
    %419 = vmatmul.mubr.bf16.gmra.mrb[0].mxu0 %v333
    %v420 = vpop.f32.mrb[0].mxu0
    %v421 = vadd.f32 0.0, %v420
    %v422 = vpop.f32.mrb[0].mxu0
    %v423 = vpop.f32.mrb[0].mxu0
    %v424 = vadd.f32 0.0, %v423
    %v425 = vpop.f32.mrb[0].mxu0
    %426 = vmatprep.mubr.bf16.mxu0 0
    %427 = vmatmul.mubr.bf16.gmra.mrb[0].mxu0 %v336
    %v428 = vpop.f32.mrb[0].mxu0
    %v429 = vadd.f32 0.0, %v428
    %v430 = vpop.f32.mrb[0].mxu0
    %v431 = vpop.f32.mrb[0].mxu0
    %v432 = vadd.f32 0.0, %v431
    %v433 = vpop.f32.mrb[0].mxu0
    %434 = vdwg.mxu0
    %v435 = vpack.c.bf16 %v376, %v373
    %v436 = vpack.c.bf16 %v384, %v381
    %v437 = vpack.c.bf16 %v392, %v389
    %v438 = vpack.c.bf16 %v400, %v397
    %v439 = vpack.c.bf16 %v408, %v405
    %v440 = vpack.c.bf16 %v416, %v413
    %v441 = vpack.c.bf16 %v424, %v421
    %v442 = vpack.c.bf16 %v432, %v429
    %v443 = vld [vmem:[%s4] sm:$0xf]
    %v444 = vld [vmem:[%s4 + $0x4] sm:$0xf]
    %v445 = vld [vmem:[%s4 + $0x8] sm:$0xf]
    %v446 = vld [vmem:[%s4 + $0xc] sm:$0xf]
    %v447 = vld [vmem:[%s4 + $0x10] sm:$0xf]
    %v448 = vld [vmem:[%s4 + $0x14] sm:$0xf]
    %v449 = vld [vmem:[%s4 + $0x18] sm:$0xf]
    %v450 = vld [vmem:[%s4 + $0x1c] sm:$0xf]
    %v451 = vld [vmem:[%s4 + $0x20] sm:$0xf]
    %v452 = vld [vmem:[%s4 + $0x24] sm:$0xf]
    %v453 = vld [vmem:[%s4 + $0x28] sm:$0xf]
    %v454 = vld [vmem:[%s4 + $0x2c] sm:$0xf]
    %v455 = vld [vmem:[%s4 + $0x30] sm:$0xf]
    %v456 = vld [vmem:[%s4 + $0x34] sm:$0xf]
    %v457 = vld [vmem:[%s4 + $0x38] sm:$0xf]
    %v458 = vld [vmem:[%s4 + $0x3c] sm:$0xf]
    %460 = vset.pattern.permute.xlu0 0
    %461 = vperm.xlu0 %460, %v443
    %v462 = vpop.permute.xlu0 %461
    %v465 = vunpack.c.l.s4 839922192
    %v466 = vunpack.c.0.s8 %v465
    %v467 = vlaneseq
    %v468 = vshrl.u32 %v467, 7
    %v469 = vsub.s32 %v466, %v468
    %v470 = vrot.slane %v462, %v469
    %472 = vset.pattern.permute.xlu0 0
    %473 = vperm.xlu0 %472, %v444
    %v474 = vpop.permute.xlu0 %473
    %v477 = vunpack.c.l.s4 839922192
    %v478 = vunpack.c.0.s8 %v477
    %v479 = vlaneseq
    %v480 = vshrl.u32 %v479, 7
    %v481 = vsub.s32 %v478, %v480
    %v482 = vrot.slane %v474, %v481
    %484 = vset.pattern.permute.xlu0 0
    %485 = vperm.xlu0 %484, %v445
    %v486 = vpop.permute.xlu0 %485
    %v489 = vunpack.c.l.s4 839922192
    %v490 = vunpack.c.0.s8 %v489
    %v491 = vlaneseq
    %v492 = vshrl.u32 %v491, 7
    %v493 = vsub.s32 %v490, %v492
    %v494 = vrot.slane %v486, %v493
    %496 = vset.pattern.permute.xlu0 0
    %497 = vperm.xlu0 %496, %v446
    %v498 = vpop.permute.xlu0 %497
    %v501 = vunpack.c.l.s4 839922192
    %v502 = vunpack.c.0.s8 %v501
    %v503 = vlaneseq
    %v504 = vshrl.u32 %v503, 7
    %v505 = vsub.s32 %v502, %v504
    %v506 = vrot.slane %v498, %v505
    %508 = vset.pattern.permute.xlu0 0
    %509 = vperm.xlu0 %508, %v447
    %v510 = vpop.permute.xlu0 %509
    %v513 = vunpack.c.l.s4 839922192
    %v514 = vunpack.c.0.s8 %v513
    %v515 = vlaneseq
    %v516 = vshrl.u32 %v515, 7
    %v517 = vsub.s32 %v514, %v516
    %v518 = vrot.slane %v510, %v517
    %520 = vset.pattern.permute.xlu0 0
    %521 = vperm.xlu0 %520, %v448
    %v522 = vpop.permute.xlu0 %521
    %v525 = vunpack.c.l.s4 839922192
    %v526 = vunpack.c.0.s8 %v525
    %v527 = vlaneseq
    %v528 = vshrl.u32 %v527, 7
    %v529 = vsub.s32 %v526, %v528
    %v530 = vrot.slane %v522, %v529
    %532 = vset.pattern.permute.xlu0 0
    %533 = vperm.xlu0 %532, %v449
    %v534 = vpop.permute.xlu0 %533
    %v537 = vunpack.c.l.s4 839922192
    %v538 = vunpack.c.0.s8 %v537
    %v539 = vlaneseq
    %v540 = vshrl.u32 %v539, 7
    %v541 = vsub.s32 %v538, %v540
    %v542 = vrot.slane %v534, %v541
    %544 = vset.pattern.permute.xlu0 0
    %545 = vperm.xlu0 %544, %v450
    %v546 = vpop.permute.xlu0 %545
    %v549 = vunpack.c.l.s4 839922192
    %v550 = vunpack.c.0.s8 %v549
    %v551 = vlaneseq
    %v552 = vshrl.u32 %v551, 7
    %v553 = vsub.s32 %v550, %v552
    %v554 = vrot.slane %v546, %v553
    %556 = vset.pattern.permute.xlu0 0
    %557 = vperm.xlu0 %556, %v451
    %v558 = vpop.permute.xlu0 %557
    %v561 = vunpack.c.l.s4 839922192
    %v562 = vunpack.c.0.s8 %v561
    %v563 = vlaneseq
    %v564 = vshrl.u32 %v563, 7
    %v565 = vsub.s32 %v562, %v564
    %v566 = vrot.slane %v558, %v565
    %568 = vset.pattern.permute.xlu0 0
    %569 = vperm.xlu0 %568, %v452
    %v570 = vpop.permute.xlu0 %569
    %v573 = vunpack.c.l.s4 839922192
    %v574 = vunpack.c.0.s8 %v573
    %v575 = vlaneseq
    %v576 = vshrl.u32 %v575, 7
    %v577 = vsub.s32 %v574, %v576
    %v578 = vrot.slane %v570, %v577
    %580 = vset.pattern.permute.xlu0 0
    %581 = vperm.xlu0 %580, %v453
    %v582 = vpop.permute.xlu0 %581
    %v585 = vunpack.c.l.s4 839922192
    %v586 = vunpack.c.0.s8 %v585
    %v587 = vlaneseq
    %v588 = vshrl.u32 %v587, 7
    %v589 = vsub.s32 %v586, %v588
    %v590 = vrot.slane %v582, %v589
    %592 = vset.pattern.permute.xlu0 0
    %593 = vperm.xlu0 %592, %v454
    %v594 = vpop.permute.xlu0 %593
    %v597 = vunpack.c.l.s4 839922192
    %v598 = vunpack.c.0.s8 %v597
    %v599 = vlaneseq
    %v600 = vshrl.u32 %v599, 7
    %v601 = vsub.s32 %v598, %v600
    %v602 = vrot.slane %v594, %v601
    %604 = vset.pattern.permute.xlu0 0
    %605 = vperm.xlu0 %604, %v455
    %v606 = vpop.permute.xlu0 %605
    %v609 = vunpack.c.l.s4 839922192
    %v610 = vunpack.c.0.s8 %v609
    %v611 = vlaneseq
    %v612 = vshrl.u32 %v611, 7
    %v613 = vsub.s32 %v610, %v612
    %v614 = vrot.slane %v606, %v613
    %616 = vset.pattern.permute.xlu0 0
    %617 = vperm.xlu0 %616, %v456
    %v618 = vpop.permute.xlu0 %617
    %v621 = vunpack.c.l.s4 839922192
    %v622 = vunpack.c.0.s8 %v621
    %v623 = vlaneseq
    %v624 = vshrl.u32 %v623, 7
    %v625 = vsub.s32 %v622, %v624
    %v626 = vrot.slane %v618, %v625
    %628 = vset.pattern.permute.xlu0 0
    %629 = vperm.xlu0 %628, %v457
    %v630 = vpop.permute.xlu0 %629
    %v633 = vunpack.c.l.s4 839922192
    %v634 = vunpack.c.0.s8 %v633
    %v635 = vlaneseq
    %v636 = vshrl.u32 %v635, 7
    %v637 = vsub.s32 %v634, %v636
    %v638 = vrot.slane %v630, %v637
    %640 = vset.pattern.permute.xlu0 0
    %641 = vperm.xlu0 %640, %v458
    %v642 = vpop.permute.xlu0 %641
    %v645 = vunpack.c.l.s4 839922192
    %v646 = vunpack.c.0.s8 %v645
    %v647 = vlaneseq
    %v648 = vshrl.u32 %v647, 7
    %v649 = vsub.s32 %v646, %v648
    %v650 = vrot.slane %v642, %v649
    %v667 = vunpack.c.l.b16 %v470
    %v668 = vunpack.c.l.b16 %v482
    %v669 = vunpack.c.l.b16 %v494
    %v670 = vunpack.c.l.b16 %v506
    %v671 = vunpack.c.l.b16 %v518
    %v672 = vunpack.c.l.b16 %v530
    %v673 = vunpack.c.l.b16 %v542
    %v674 = vunpack.c.l.b16 %v554
    %v675 = vunpack.c.l.b16 %v566
    %v676 = vunpack.c.l.b16 %v578
    %v677 = vunpack.c.l.b16 %v590
    %v678 = vunpack.c.l.b16 %v602
    %v679 = vunpack.c.l.b16 %v614
    %v680 = vunpack.c.l.b16 %v626
    %v681 = vunpack.c.l.b16 %v638
    %v682 = vunpack.c.l.b16 %v650
    %v683 = vpack.c.b16 %v668, %v667
    %v684 = vpack.c.b16 %v670, %v669
    %v685 = vpack.c.b16 %v672, %v671
    %v686 = vpack.c.b16 %v674, %v673
    %v687 = vpack.c.b16 %v676, %v675
    %v688 = vpack.c.b16 %v678, %v677
    %v689 = vpack.c.b16 %v680, %v679
    %v690 = vpack.c.b16 %v682, %v681
    %v699 = vadd.bf16 %v435, %v683
    %v700 = vadd.bf16 %v436, %v684
    %v701 = vadd.bf16 %v437, %v685
    %v702 = vadd.bf16 %v438, %v686
    %v703 = vadd.bf16 %v439, %v687
    %v704 = vadd.bf16 %v440, %v688
    %v705 = vadd.bf16 %v441, %v689
    %v706 = vadd.bf16 %v442, %v690
    %v707 = vmax.bf16 %v699, 0
    %v708 = vmax.bf16 %v700, 0
    %v709 = vmax.bf16 %v701, 0
    %v710 = vmax.bf16 %v702, 0
    %v711 = vmax.bf16 %v703, 0
    %v712 = vmax.bf16 %v704, 0
    %v713 = vmax.bf16 %v705, 0
    %v714 = vmax.bf16 %v706, 0
    %v715 = vld [vmem:[%s5] sm:$0x1]
    %v716 = vld [vmem:[%s6] sm:$0x3]
    %718 = vset.pattern.permute.xlu0 0
    %719 = vperm.xlu0 %718, %v716
    %v720 = vpop.permute.xlu0 %719
    %722 = vmatprep.subr.bf16.mxu0 0
    %723 = vmatpush1.bf16.msra.mxu0 %v707
    %724 = vmatprep.subr.bf16.mxu0 0
    %725 = vmatpush1.bf16.msra.mxu0 %v708
    %726 = vmatprep.subr.bf16.mxu0 0
    %727 = vmatpush1.bf16.msra.mxu0 %v709
    %728 = vmatprep.subr.bf16.mxu0 0
    %729 = vmatpush1.bf16.msra.mxu0 %v710
    %730 = vmatprep.subr.bf16.mxu0 0
    %731 = vmatpush1.bf16.msra.mxu0 %v711
    %732 = vmatprep.subr.bf16.mxu0 0
    %733 = vmatpush1.bf16.msra.mxu0 %v712
    %734 = vmatprep.subr.bf16.mxu0 0
    %735 = vmatpush1.bf16.msra.mxu0 %v713
    %736 = vmatprep.subr.bf16.mxu0 0
    %737 = vmatpush1.bf16.msra.mxu0 %v714
    %738 = vmatprep.subr.bf16.mxu0 0
    %739 = vmatpush1.bf16.msra.mxu0 0
    %740 = vmatprep.subr.bf16.mxu0 0
    %741 = vmatpush1.bf16.msra.mxu0 0
    %742 = vmatprep.subr.bf16.mxu0 0
    %743 = vmatpush1.bf16.msra.mxu0 0
    %744 = vmatprep.subr.bf16.mxu0 0
    %745 = vmatpush1.bf16.msra.mxu0 0
    %746 = vmatprep.subr.bf16.mxu0 0
    %747 = vmatpush1.bf16.msra.mxu0 0
    %748 = vmatprep.subr.bf16.mxu0 0
    %749 = vmatpush1.bf16.msra.mxu0 0
    %750 = vmatprep.subr.bf16.mxu0 0
    %751 = vmatpush1.bf16.msra.mxu0 0
    %752 = vmatprep.subr.bf16.mxu0 0
    %753 = vmatpush1.bf16.msra.mxu0 0
    %754 = vmatprep.mubr.bf16.mxu0 0
    %755 = vmatmul.mubr.bf16.gmra.mrb[0].mxu0 %v715
    %v756 = vpop.f32.mrb[0].mxu0
    %v757 = vadd.f32 %v720, %v756
    %v758 = vpop.f32.mrb[0].mxu0
    %v759 = vpop.f32.mrb[0].mxu0
    %v760 = vpop.f32.mrb[0].mxu0
    %761 = vdwg.mxu0
    %762 = vst [vmem:[#allocation2] sm:$0x3] %v757
    // Predicated region
    $region30: #{tpu_custom_call.1} parent=1 // pred_check
      _
    $region31: #{tpu_custom_call.1} parent=1 // pred_check_branch
      %764 = sbr.rel (0) target = $region33
    $region32: #{tpu_custom_call.1} parent=1 // pred_region
      %s766 = ssub.s32 32, 32
      %767 = vsyncadd [#allocation3], %s766
      %s769 = sshll.u32 [#allocation2], 4
      %s770 = int_to_ptr.vmem [resolvable:$true] %s769
      %772 = dma.vmem_to_hbm [thread:$0]  %s770, 32, %s7, [#allocation3]
    $region33: #{tpu_custom_call.1} parent=1 // pred_fallthru
      _
    // Predicated region
    $region34: #{tpu_custom_call.1} parent=1 // pred_check
      _
    $region35: #{tpu_custom_call.1} parent=1 // pred_check_branch
      %774 = sbr.rel (0) target = $region37
    $region36: #{tpu_custom_call.1} parent=1 // pred_region
      %775 = dma.done [#allocation3], 32
    $region37: #{tpu_custom_call.1} parent=1 // pred_fallthru
      _
    %776 = vsyncpa [#allocation3], 1

</llo_original>
